<compile_context>
chip_gen: v5e
topology: v5e:2x2
jax: 0.10.0
libtpu: 0.0.40
codegen_flags: <defaults>
</compile_context>

<pallas_src>
import jax
import jax.numpy as jnp
from jax.experimental import pallas as pl
from jax.experimental.pallas import tpu as pltpu


def _round_up(a, b):
    return (a + b - 1) // b * b


def _global_star_kernel(x_ref, w_ref, b_ref, o_ref):
    """o = x + x @ W + b on one (tm, L) tile. W is (L, L), b is (1, L) f32."""
    x = x_ref[...]
    acc = jnp.dot(x, w_ref[...], preferred_element_type=jnp.float32)
    o_ref[...] = (x.astype(jnp.float32) + acc + b_ref[...]).astype(o_ref.dtype)


def global_star(x, wg, bg, wf, bf, *, tile_rows=None):
    """Eval-mode GlobalSTAR forward.

    x:  (B, T, C)
    wg: (d_core, C)      bg: (d_core,)     -- core_gen Linear
    wf: (C, C + d_core)  bf: (C,)          -- fusion_net Linear
    """
    B, T, C = x.shape
    M = B * T
    out_dtype = x.dtype

    # ---- fold the whole op into one (C, C) weight + (C,) bias (f32 math) ----
    wg32 = wg.astype(jnp.float32)
    wf32 = wf.astype(jnp.float32)
    m_vec = jnp.mean(wg32, axis=0)                       # (C,) mean_cols(Wg^T)
    w2sum = jnp.sum(wf32[:, C:], axis=1)                 # (C,) sum_rows(Wf2^T)
    w_eff = wf32[:, :C].T + jnp.outer(m_vec, w2sum)      # (C, C): x @ W_eff
    b_eff = bf.astype(jnp.float32) + jnp.mean(bg.astype(jnp.float32)) * w2sum

    # ---- lane-dense packing (free views only, no HBM passes) ----
    if 0 < C <= 128 and 128 % C == 0 and M % (128 // C) == 0:
        G = 128 // C
        L = G * C                                        # 128 lanes
        x2 = x.reshape(M // G, L)                        # free contiguous view
        w_k = jnp.kron(jnp.eye(G, dtype=jnp.float32), w_eff)   # (128,128) blockdiag
        b_k = jnp.tile(b_eff, (G,)).reshape(1, L)
    else:
        # Fallback: natural (rows, C) layout (masked stores when C < 128).
        L = C
        x2 = x.reshape(M, C)
        w_k = w_eff
        b_k = b_eff.reshape(1, C)

    w_k = w_k.astype(x.dtype)      # MXU operands follow x's dtype; bias stays f32
    rows = x2.shape[0]
    itemsize = jnp.dtype(x.dtype).itemsize

    # ---- row tiling: ~4 MiB input tile, rows a multiple of 8; ragged tail OK ----
    if tile_rows is None:
        tile_rows = max(1024, (4 << 20) // (L * itemsize))
    if rows <= tile_rows:
        tm = rows                              # single block == full array dims
    else:
        tm = _round_up(min(int(tile_rows), rows), 8)
    grid = (pl.cdiv(rows, tm),)

    # ---- real VMEM budget: 2x in-tile + 2x out-tile + W + b + headroom ----
    est = 4 * tm * L * itemsize + L * L * itemsize + 4 * L + (2 << 20)
    vmem_limit = int(min(max(est, 16 << 20), 48 << 20))

    out2 = pl.pallas_call(
        _global_star_kernel,
        out_shape=jax.ShapeDtypeStruct((rows, L), out_dtype),
        grid_spec=pltpu.PrefetchScalarGridSpec(
            num_scalar_prefetch=0,
            grid=grid,
            in_specs=[
                pl.BlockSpec((tm, L), lambda i: (i, 0)),   # x tile (lane-dense)
                pl.BlockSpec((L, L), lambda i: (0, 0)),    # folded weight (resident)
                pl.BlockSpec((1, L), lambda i: (0, 0)),    # bias (f32, resident)
            ],
            out_specs=pl.BlockSpec((tm, L), lambda i: (i, 0)),
        ),
        compiler_params=pltpu.CompilerParams(
            dimension_semantics=("parallel",),
            vmem_limit_bytes=vmem_limit,
        ),
    )(x2, w_k, b_k)

    return out2.reshape(B, T, C)


def global_star_ref(x, wg, bg, wf, bf):
    """Pure-JAX reference mirroring the PyTorch eval-mode forward."""
    B, T, C = x.shape
    d_core = wg.shape[0]
    xf = x.astype(jnp.float32)
    core = jnp.einsum("btc,dc->btd", xf, wg.astype(jnp.float32)) + bg
    gc = jnp.mean(core, axis=2, keepdims=True)
    gc_exp = jnp.broadcast_to(gc, (B, T, d_core))
    fused_in = jnp.concatenate([xf, gc_exp], axis=-1)
    fused_out = jnp.einsum("btk,ck->btc", fused_in, wf.astype(jnp.float32)) + bf
    return xf + fused_out


def _make_inputs(B, T, C, d_core, key):
    kx, kwg, kbg, kwf, kbf = jax.random.split(key, 5)
    x = jax.random.normal(kx, (B, T, C), dtype=jnp.float32)
    wg = jax.random.normal(kwg, (d_core, C), dtype=jnp.float32) * (1.0 / C ** 0.5)
    bg = jax.random.normal(kbg, (d_core,), dtype=jnp.float32) * 0.01
    wf = jax.random.normal(kwf, (C, C + d_core), dtype=jnp.float32) * (1.0 / (C + d_core) ** 0.5)
    bf = jax.random.normal(kbf, (C,), dtype=jnp.float32) * 0.01
    return x, wg, bg, wf, bf


if __name__ == "__main__":
    root = jax.random.PRNGKey(0)
    k1, k2, k3 = jax.random.split(root, 3)

    # 1) Canonical small shape, f32, lane-dense fast path (C=32 -> 128-lane pack).
    B, T, C = 2, 8, 32
    x, wg, bg, wf, bf = _make_inputs(B, T, C, C // 2, k1)
    out = jax.block_until_ready(global_star(x, wg, bg, wf, bf))
    ref = global_star_ref(x, wg, bg, wf, bf)
    assert out.shape == (B, T, C)
    assert jnp.allclose(out, ref, atol=1e-4, rtol=1e-4), "f32 fast-path mismatch"

    # 2) Multi-tile grid with a ragged last block (forced small tile).
    B2, T2, C2 = 3, 700, 32
    x2, wg2, bg2, wf2, bf2 = _make_inputs(B2, T2, C2, C2 // 2, k2)
    out2 = jax.block_until_ready(global_star(x2, wg2, bg2, wf2, bf2, tile_rows=128))
    ref2 = global_star_ref(x2, wg2, bg2, wf2, bf2)
    assert out2.shape == (B2, T2, C2)
    assert jnp.allclose(out2, ref2, atol=1e-4, rtol=1e-4), "multi-tile mismatch"

    # 3) Fallback layout (C does not divide 128).
    B3, T3, C3 = 2, 9, 48
    x3, wg3, bg3, wf3, bf3 = _make_inputs(B3, T3, C3, C3 // 2, k3)
    out3 = jax.block_until_ready(global_star(x3, wg3, bg3, wf3, bf3))
    ref3 = global_star_ref(x3, wg3, bg3, wf3, bf3)
    assert out3.shape == (B3, T3, C3)
    assert jnp.allclose(out3, ref3, atol=1e-4, rtol=1e-4), "fallback-path mismatch"

    # 4) bf16 activations end-to-end (no wrapper cast of f32 inputs — the caller
    #    already holds bf16): MXU operands bf16, f32 accumulation + epilogue.
    out4 = jax.block_until_ready(global_star(x.astype(jnp.bfloat16), wg, bg, wf, bf))
    assert out4.dtype == jnp.bfloat16 and out4.shape == (B, T, C)
    assert jnp.allclose(out4.astype(jnp.float32), ref, atol=1e-1, rtol=1e-1), \
        "bf16 path mismatch"

    print("KERNEL_OK")
</pallas_src>

<mosaic_0001>
module attributes {stable_mosaic.version = 11 : i64} {
  func.func @_global_star_kernel(%arg0: i32, %arg1: memref<4x128xf32, #tpu.memory_space<vmem>>, %arg2: memref<128x128xf32, #tpu.memory_space<vmem>>, %arg3: memref<1x128xf32, #tpu.memory_space<vmem>>, %arg4: memref<4x128xf32, #tpu.memory_space<vmem>>) attributes {dimension_semantics = [#tpu.dimension_semantics<parallel>], iteration_bounds = array<i64: 1>, scalar_prefetch = 0 : i64, scratch_operands = 0 : i64, tpu.core_type = #tpu.core_type<tc>, window_params = [{transform_indices = @transform_0, window_bounds = array<i64: 4, 128>}, {pipeline_mode = #tpu.pipeline_mode<synchronous>, transform_indices = @transform_1, window_bounds = array<i64: 128, 128>}, {pipeline_mode = #tpu.pipeline_mode<synchronous>, transform_indices = @transform_2, window_bounds = array<i64: 1, 128>}, {transform_indices = @transform_3, window_bounds = array<i64: 4, 128>}]} {
    %c0 = arith.constant 0 : index
    %c0_0 = arith.constant 0 : index
    %0 = vector.load %arg1[%c0, %c0_0] : memref<4x128xf32, #tpu.memory_space<vmem>>, vector<4x128xf32>
    %c0_1 = arith.constant 0 : index
    %c0_2 = arith.constant 0 : index
    %1 = vector.load %arg2[%c0_1, %c0_2] : memref<128x128xf32, #tpu.memory_space<vmem>>, vector<128x128xf32>
    %cst = arith.constant dense<0.000000e+00> : vector<4x128xf32>
    %2 = tpu.matmul %0, %1, %cst {dimension_numbers = #tpu.dot_dimension_numbers<[1], [0], [0], [1], [0, 0, 1, 1], [], []>} : vector<4x128xf32>, vector<128x128xf32>, vector<4x128xf32> -> vector<4x128xf32>
    %3 = arith.addf %0, %2 : vector<4x128xf32>
    %c0_3 = arith.constant 0 : index
    %c0_4 = arith.constant 0 : index
    %4 = vector.load %arg3[%c0_3, %c0_4] : memref<1x128xf32, #tpu.memory_space<vmem>>, vector<1x128xf32>
    %5 = vector.broadcast %4 : vector<1x128xf32> to vector<4x128xf32>
    %6 = arith.addf %3, %5 : vector<4x128xf32>
    %c0_5 = arith.constant 0 : index
    %c0_6 = arith.constant 0 : index
    %7 = vector.load %arg4[%c0_5, %c0_6] : memref<4x128xf32, #tpu.memory_space<vmem>>, vector<4x128xf32>
    tpu.vector_store %arg4[%c0_5, %c0_6], %6 {strides = array<i32>} : memref<4x128xf32, #tpu.memory_space<vmem>>, vector<4x128xf32>,
    return
  }
  func.func @transform_0(%arg0: i32) -> (i32, i32) {
    %c0_i32 = arith.constant 0 : i32
    %c0_i32_0 = arith.constant 0 : i32
    return %arg0, %c0_i32 : i32, i32
  }
  func.func @transform_1(%arg0: i32) -> (i32, i32) {
    %c0_i32 = arith.constant 0 : i32
    %c0_i32_0 = arith.constant 0 : i32
    %c0_i32_1 = arith.constant 0 : i32
    return %c0_i32, %c0_i32_0 : i32, i32
  }
  func.func @transform_2(%arg0: i32) -> (i32, i32) {
    %c0_i32 = arith.constant 0 : i32
    %c0_i32_0 = arith.constant 0 : i32
    %c0_i32_1 = arith.constant 0 : i32
    return %c0_i32, %c0_i32_0 : i32, i32
  }
  func.func @transform_3(%arg0: i32) -> (i32, i32) {
    %c0_i32 = arith.constant 0 : i32
    %c0_i32_0 = arith.constant 0 : i32
    return %arg0, %c0_i32 : i32, i32
  }
}

</mosaic_0001>

<llo_original>
// kernel: tpu_custom_call.1
$region0: #{tpu_custom_call.1}
  #allocation0 [shape = 'u32[]', space=smem, size = 0x4, offset = 0x4, fixed_abs, tag = 'smem constant byte address 0x4 - core index']
  #allocation1 [shape = 'u32[72,128]{1,0:T(1,128)}', space=vmem, size = 0x9000, scoped, tag = 'internal scratch']
  %s0 = inlined_call_operand.hbm [shape: f32[4,128], index: 0, kind: input, shape index: {}]
  %s1 = inlined_call_operand.hbm [shape: f32[128,128], index: 1, kind: input, shape index: {}]
  %s2 = inlined_call_operand.vmem [shape: f32[1,128], index: 2, kind: input, shape index: {}]
  %s3 = inlined_call_operand.hbm [shape: f32[4,128], index: 3, kind: output, shape index: {}]
  %s4 = sld [smem:[#allocation0]]
  $region30: #{tpu_custom_call.1} parent=0
    _
  %s6 = ssub.s32 1, %s4
  %s7 = scalar_select 0, %s6, %s4
  $region1: #{tpu_custom_call.1} parent=0
    #allocation2 [shape = 'u8[2048]{0}', space=vmem, size = 0x800, scoped, tag = 'input window, operand 0, single buffered']
    #allocation3 [shape = 's32[1]{0}', space=sflag, size = 0x4, scoped, tag = 'scoped memory for tpu_custom_call.1']
    #allocation4 [shape = 's32[1]{0}', space=sflag, size = 0x4, scoped, tag = 'scoped memory for tpu_custom_call.1']
    #allocation5 [shape = 'u8[65536]{0}', space=vmem, size = 0x10000, scoped, tag = 'input window, operand 1, single buffered']
    #allocation6 [shape = 's32[1]{0}', space=sflag, size = 0x4, scoped, tag = 'scoped memory for tpu_custom_call.1']
    #allocation7 [shape = 'u8[2048]{0}', space=vmem, size = 0x800, scoped, tag = 'output window, operand 0, single buffered']
    %8 = vsyncpa [#allocation3], 0
    %9 = vsyncpa [#allocation6], 0
    %10 = vsyncpa [#allocation4], 0
    // Predicated region
    $region2: #{tpu_custom_call.1} parent=1 // pred_check
      _
    $region3: #{tpu_custom_call.1} parent=1 // pred_check_branch
      %12 = sbr.rel (0) target = $region5
    $region4: #{tpu_custom_call.1} parent=1 // pred_region
      %14 = vsyncadd [#allocation3], 0
      %s16 = sshll.u32 %s0, 4
      %s17 = int_to_ptr.hbm [resolvable:$true] %s16
      %s18 = sshll.u32 [#allocation2], 4
      %s19 = int_to_ptr.vmem [resolvable:$true] %s18
      %21 = dma.hbm_to_vmem [thread:$0]  %s17, 64, %s19, [#allocation3]
    $region5: #{tpu_custom_call.1} parent=1 // pred_fallthru
      _
    // Predicated region
    $region6: #{tpu_custom_call.1} parent=1 // pred_check
      _
    $region7: #{tpu_custom_call.1} parent=1 // pred_check_branch
      %23 = sbr.rel (0) target = $region9
    $region8: #{tpu_custom_call.1} parent=1 // pred_region
      %25 = vsyncadd [#allocation6], 0
      %s26 = sshll.u32 %s1, 4
      %s27 = int_to_ptr.hbm [resolvable:$true] %s26
      %s28 = sshll.u32 [#allocation5], 4
      %s29 = int_to_ptr.vmem [resolvable:$true] %s28
      %34 = dma.hbm_to_vmem [thread:$0]  %s27, 2048, %s29, [#allocation6], 128, 128, 8
    $region9: #{tpu_custom_call.1} parent=1 // pred_fallthru
      _
    // Predicated region
    $region10: #{tpu_custom_call.1} parent=1 // pred_check
      _
    $region11: #{tpu_custom_call.1} parent=1 // pred_check_branch
      %36 = sbr.rel (0) target = $region13
    $region12: #{tpu_custom_call.1} parent=1 // pred_region
      _
    $region13: #{tpu_custom_call.1} parent=1 // pred_fallthru
      _
    // Predicated region
    $region14: #{tpu_custom_call.1} parent=1 // pred_check
      _
    $region15: #{tpu_custom_call.1} parent=1 // pred_check_branch
      %38 = sbr.rel (0) target = $region17
    $region16: #{tpu_custom_call.1} parent=1 // pred_region
      %40 = dma.done [#allocation3], 64
    $region17: #{tpu_custom_call.1} parent=1 // pred_fallthru
      _
    // Predicated region
    $region18: #{tpu_custom_call.1} parent=1 // pred_check
      _
    $region19: #{tpu_custom_call.1} parent=1 // pred_check_branch
      %42 = sbr.rel (0) target = $region21
    $region20: #{tpu_custom_call.1} parent=1 // pred_region
      %44 = dma.done [#allocation6], 2048
    $region21: #{tpu_custom_call.1} parent=1 // pred_fallthru
      _
    %v45 = vld [vmem:[#allocation2] sm:$0xf]
    %v46 = vld [vmem:[#allocation5] sm:$0xff]
    %v47 = vld [vmem:[#allocation5 + $0x8] sm:$0xff]
    %v48 = vld [vmem:[#allocation5 + $0x10] sm:$0xff]
    %v49 = vld [vmem:[#allocation5 + $0x18] sm:$0xff]
    %v50 = vld [vmem:[#allocation5 + $0x20] sm:$0xff]
    %v51 = vld [vmem:[#allocation5 + $0x28] sm:$0xff]
    %v52 = vld [vmem:[#allocation5 + $0x30] sm:$0xff]
    %v53 = vld [vmem:[#allocation5 + $0x38] sm:$0xff]
    %v54 = vld [vmem:[#allocation5 + $0x40] sm:$0xff]
    %v55 = vld [vmem:[#allocation5 + $0x48] sm:$0xff]
    %v56 = vld [vmem:[#allocation5 + $0x50] sm:$0xff]
    %v57 = vld [vmem:[#allocation5 + $0x58] sm:$0xff]
    %v58 = vld [vmem:[#allocation5 + $0x60] sm:$0xff]
    %v59 = vld [vmem:[#allocation5 + $0x68] sm:$0xff]
    %v60 = vld [vmem:[#allocation5 + $0x70] sm:$0xff]
    %v61 = vld [vmem:[#allocation5 + $0x78] sm:$0xff]
    %62 = vmatpush.msra.mxu0 %v61
    %63 = vmatpush.msra.mxu0 %v60
    %64 = vmatpush.msra.mxu0 %v59
    %65 = vmatpush.msra.mxu0 %v58
    %66 = vmatpush.msra.mxu0 %v57
    %67 = vmatpush.msra.mxu0 %v56
    %68 = vmatpush.msra.mxu0 %v55
    %69 = vmatpush.msra.mxu0 %v54
    %70 = vmatpush.msra.mxu0 %v53
    %71 = vmatpush.msra.mxu0 %v52
    %72 = vmatpush.msra.mxu0 %v51
    %73 = vmatpush.msra.mxu0 %v50
    %74 = vmatpush.msra.mxu0 %v49
    %75 = vmatpush.msra.mxu0 %v48
    %76 = vmatpush.msra.mxu0 %v47
    %77 = vmatpush.msra.mxu0 %v46
    %78 = vmatmul.f32.gmra.mxu0 %v45
    %v79 = vpop.f32.mrf.mxu0
    %v80 = vadd.f32 0.0, %v79
    %81 = vdwg.mxu0
    %v82 = vadd.f32 %v45, %v80
    %v83 = vld [vmem:[%s2] sm:$0x1]
    %v85 = vperm.slane %v83, 0
    %v87 = vadd.f32 %v82, %v85
    %88 = vst [vmem:[#allocation7] sm:$0xf] %v87
    // Predicated region
    $region22: #{tpu_custom_call.1} parent=1 // pred_check
      _
    $region23: #{tpu_custom_call.1} parent=1 // pred_check_branch
      %90 = sbr.rel (0) target = $region25
    $region24: #{tpu_custom_call.1} parent=1 // pred_region
      %92 = vsyncadd [#allocation4], 0
      %s94 = sshll.u32 [#allocation7], 4
      %s95 = int_to_ptr.vmem [resolvable:$true] %s94
      %s96 = sshll.u32 %s3, 4
      %s97 = int_to_ptr.hbm [resolvable:$true] %s96
      %99 = dma.vmem_to_hbm [thread:$0]  %s95, 64, %s97, [#allocation4]
    $region25: #{tpu_custom_call.1} parent=1 // pred_fallthru
      _
    // Predicated region
    $region26: #{tpu_custom_call.1} parent=1 // pred_check
      _
    $region27: #{tpu_custom_call.1} parent=1 // pred_check_branch
      %101 = sbr.rel (0) target = $region29
    $region28: #{tpu_custom_call.1} parent=1 // pred_region
      %103 = dma.done [#allocation4], 64
    $region29: #{tpu_custom_call.1} parent=1 // pred_fallthru
      _
    %104 = vsyncpa [#allocation3], 1
    %105 = vsyncpa [#allocation6], 1
    %106 = vsyncpa [#allocation4], 1

</llo_original>
